<compile_context>
chip_gen: v7x
topology: tpu7x:2x2x1
jax: 0.10.0
libtpu: 0.0.40
codegen_flags: <defaults>
</compile_context>

<pallas_src>
import jax
import jax.numpy as jnp
from jax.experimental import pallas as pl
from jax.experimental.pallas import tpu as pltpu

IN_FEATURES = 2 * 52        # 104, as in the PyTorch module
DIMENSIONS = 64
N_HIDDEN = 4
LANE = 128
TB_MAX = 2048               # batch-tile rows: >=2 tiles for big batches, small VMEM


def _elu(v):
    # ELU(alpha=1). The select discards the +inf from exp(large positive v), so no
    # clamp is needed; exp(v)-1 keeps the negative branch on the EUP for f32 and bf16.
    return jnp.where(v > 0, v, jnp.exp(v) - 1.0)


def _sigmoid(v):
    return 1.0 / (1.0 + jnp.exp(-v))


def _make_kernel(act_dtype):
    """Builds the kernel with the elementwise dtype baked in (bf16 on v6e/v7x, f32 on v5e)."""

    def qnn_kernel(x_ref, w_in_t_ref, b_in_ref, w_h_ref, b_h_ref, w_out_ref,
                   b_out_ref, o_ref):
        # Input layer, batch-major: (TB,104) @ (104,64) on the MXU, bf16 in / f32 acc.
        x = x_ref[...].astype(jnp.bfloat16)                       # in-kernel cast
        h = jnp.dot(x, w_in_t_ref[...], preferred_element_type=jnp.float32)
        b_in = b_in_ref[...].astype(act_dtype)                    # (1, 64), tiny cast
        h = _elu(h.astype(act_dtype) + b_in)                      # (TB, 64)

        # Single transpose to feature-major (64, TB), bf16 (rides the idle XLU slot).
        ht = h.astype(jnp.bfloat16).T                             # (64, TB)

        # Hidden layers (static unroll): (64,64) @ (64,TB) on the MXU.
        for i in range(N_HIDDEN):
            a = jnp.dot(w_h_ref[i], ht, preferred_element_type=jnp.float32)
            b_h = b_h_ref[i].astype(act_dtype)                    # (64, 1), tiny cast
            a = _elu(a.astype(act_dtype) + b_h)                   # (64, TB)
            ht = a.astype(jnp.bfloat16)

        # Output layer on the MXU: (1,64) @ (64,TB) -> lane-dense (1, TB) row.
        logits = jnp.dot(w_out_ref[...], ht, preferred_element_type=jnp.float32)
        logits = logits + b_out_ref[...]                          # (1, 1) f32
        o_ref[...] = _sigmoid(logits)

    return qnn_kernel


def _round_up(n, m):
    return ((n + m - 1) // m) * m


def _tiling(B, tb_max):
    want = -(-B // tb_max)                         # cdiv
    if B > 2 * LANE:                               # big enough to split across 2 TCs
        want = max(want, 2)
    TB = _round_up(-(-B // want), LANE)            # lane-aligned batch tile
    num_tiles = -(-B // TB)
    return num_tiles, TB


def _default_act_dtype():
    # bf16 VPU/EUP exist on v6e/v7x; keep elementwise math in f32 on v5e and older.
    try:
        kind = jax.devices()[0].device_kind.lower()
    except Exception:
        return jnp.float32
    return jnp.bfloat16 if ("v6" in kind or "v7" in kind) else jnp.float32


def qnn_forward(x, params, *, tb_max=TB_MAX, act_dtype=None):
    """x: (B, 104) float32. Returns (B,) float32, matching x.view(len(x)) in PyTorch."""
    w_in_t, b_in, w_h, b_h, w_out, b_out = params
    if act_dtype is None:
        act_dtype = _default_act_dtype()

    B = x.shape[0]
    num_tiles, TB = _tiling(B, tb_max)
    B_pad = num_tiles * TB
    if B_pad != B:
        # Only copy x when the batch is ragged; padded rows are sliced off at the end.
        x = jnp.pad(x, ((0, B_pad - B), (0, 0)))

    const2 = lambda i: (0, 0)
    const3 = lambda i: (0, 0, 0)

    param_bytes = sum(int(p.size) * p.dtype.itemsize
                      for p in (w_in_t, b_in, w_h, b_h, w_out, b_out))
    cost = pl.CostEstimate(
        flops=2 * B_pad * (IN_FEATURES * DIMENSIONS
                           + N_HIDDEN * DIMENSIONS * DIMENSIONS + DIMENSIONS),
        transcendentals=B_pad * ((N_HIDDEN + 1) * DIMENSIONS + 1),
        bytes_accessed=B_pad * IN_FEATURES * 4 + B_pad * 4 + param_bytes,
    )

    out = pl.pallas_call(
        _make_kernel(act_dtype),
        grid=(num_tiles,),
        in_specs=[
            pl.BlockSpec((TB, IN_FEATURES), lambda i: (i, 0)),          # x tile (native)
            pl.BlockSpec((IN_FEATURES, DIMENSIONS), const2),            # w_in^T (resident)
            pl.BlockSpec((1, DIMENSIONS), const2),                      # b_in   (resident)
            pl.BlockSpec((N_HIDDEN, DIMENSIONS, DIMENSIONS), const3),   # w_h    (resident)
            pl.BlockSpec((N_HIDDEN, DIMENSIONS, 1), const3),            # b_h    (resident)
            pl.BlockSpec((1, DIMENSIONS), const2),                      # w_out  (resident)
            pl.BlockSpec((1, 1), const2),                               # b_out  (resident)
        ],
        out_specs=pl.BlockSpec((1, TB), lambda i: (0, i)),              # lane-dense output
        out_shape=jax.ShapeDtypeStruct((1, B_pad), jnp.float32),
        compiler_params=pltpu.CompilerParams(
            dimension_semantics=("parallel",),   # shard batch tiles across v7x's 2 TCs
        ),
        cost_estimate=cost,
    )(x, w_in_t, b_in, w_h, b_h, w_out, b_out)

    # Equivalent of x.view(len(x)) plus dropping the batch padding — pure glue.
    return out.reshape(B_pad)[:B]


def init_params(key):
    """Deterministic synthetic init, same shapes as the PyTorch module.

    w_in is stored transposed (in, out) for the batch-major first matmul; w_h stays in
    PyTorch (out, in) layout (used as W @ h in feature-major); w_out is the (1, 64)
    PyTorch row.  MXU weights are bf16; biases stay f32 and are cast in-kernel.
    """
    keys = jax.random.split(key, 6)
    s_in = 1.0 / jnp.sqrt(IN_FEATURES)
    s_h = 1.0 / jnp.sqrt(DIMENSIONS)

    w_in_t = jax.random.uniform(keys[0], (IN_FEATURES, DIMENSIONS), jnp.float32,
                                -s_in, s_in).astype(jnp.bfloat16)
    b_in = jax.random.uniform(keys[1], (1, DIMENSIONS), jnp.float32, -s_in, s_in)
    w_h = jax.random.uniform(keys[2], (N_HIDDEN, DIMENSIONS, DIMENSIONS), jnp.float32,
                             -s_h, s_h).astype(jnp.bfloat16)
    b_h = jax.random.uniform(keys[3], (N_HIDDEN, DIMENSIONS, 1), jnp.float32, -s_h, s_h)
    w_out = jax.random.uniform(keys[4], (1, DIMENSIONS), jnp.float32,
                               -s_h, s_h).astype(jnp.bfloat16)
    b_out = jax.random.uniform(keys[5], (1, 1), jnp.float32, -s_h, s_h)
    return (w_in_t, b_in, w_h, b_h, w_out, b_out)


def qnn_reference(x, params, act_dtype):
    """Pure-JAX, batch-major reference with the same cast pattern as the kernel."""
    w_in_t, b_in, w_h, b_h, w_out, b_out = params
    h = jnp.dot(x.astype(jnp.bfloat16), w_in_t, preferred_element_type=jnp.float32)
    h = _elu(h.astype(act_dtype) + b_in.astype(act_dtype))
    h = h.astype(jnp.bfloat16)
    for i in range(N_HIDDEN):
        a = jnp.dot(h, w_h[i].T, preferred_element_type=jnp.float32)
        a = _elu(a.astype(act_dtype) + b_h[i].reshape(1, -1).astype(act_dtype))
        h = a.astype(jnp.bfloat16)
    logits = jnp.dot(h, w_out.reshape(-1, 1),
                     preferred_element_type=jnp.float32) + b_out[0, 0]
    return _sigmoid(logits.astype(jnp.float32)).reshape(-1)


if __name__ == "__main__":
    key = jax.random.PRNGKey(0)
    k_x, k_p = jax.random.split(key)

    B = 8
    x = jax.random.normal(k_x, (B, IN_FEATURES), jnp.float32)
    params = init_params(k_p)
    act_dtype = _default_act_dtype()

    y = jax.block_until_ready(qnn_forward(x, params, act_dtype=act_dtype))
    y_ref = qnn_reference(x, params, act_dtype)

    assert y.shape == (B,), f"bad output shape {y.shape}"
    assert jnp.allclose(y, y_ref, atol=2e-3, rtol=2e-3), "mismatch vs reference"

    print("KERNEL_OK")
</pallas_src>

<mosaic_0001>
module attributes {stable_mosaic.version = 11 : i64} {
  func.func @qnn_kernel(%arg0: i32, %arg1: memref<128x104xf32, #tpu.memory_space<vmem>>, %arg2: memref<104x64xbf16, #tpu.memory_space<vmem>>, %arg3: memref<1x64xf32, #tpu.memory_space<vmem>>, %arg4: memref<4x64x64xbf16, #tpu.memory_space<vmem>>, %arg5: memref<4x64x1xf32, #tpu.memory_space<vmem>>, %arg6: memref<1x64xbf16, #tpu.memory_space<vmem>>, %arg7: memref<1x1xf32, #tpu.memory_space<vmem>>, %arg8: memref<1x128xf32, #tpu.memory_space<vmem>>) attributes {dimension_semantics = [#tpu.dimension_semantics<parallel>], iteration_bounds = array<i64: 1>, scalar_prefetch = 0 : i64, scratch_operands = 0 : i64, tpu.core_type = #tpu.core_type<tc>, window_params = [{transform_indices = @transform_0, window_bounds = array<i64: 128, 104>}, {pipeline_mode = #tpu.pipeline_mode<synchronous>, transform_indices = @transform_1, window_bounds = array<i64: 104, 64>}, {pipeline_mode = #tpu.pipeline_mode<synchronous>, transform_indices = @transform_2, window_bounds = array<i64: 1, 64>}, {pipeline_mode = #tpu.pipeline_mode<synchronous>, transform_indices = @transform_3, window_bounds = array<i64: 4, 64, 64>}, {pipeline_mode = #tpu.pipeline_mode<synchronous>, transform_indices = @transform_4, window_bounds = array<i64: 4, 64, 1>}, {pipeline_mode = #tpu.pipeline_mode<synchronous>, transform_indices = @transform_5, window_bounds = array<i64: 1, 64>}, {pipeline_mode = #tpu.pipeline_mode<synchronous>, transform_indices = @transform_6, window_bounds = array<i64: 1, 1>}, {transform_indices = @transform_7, window_bounds = array<i64: 1, 128>}]} {
    %c0 = arith.constant 0 : index
    %c0_0 = arith.constant 0 : index
    %0 = vector.load %arg1[%c0, %c0_0] : memref<128x104xf32, #tpu.memory_space<vmem>>, vector<128x104xf32>
    %1 = arith.truncf %0 : vector<128x104xf32> to vector<128x104xbf16>
    %c0_1 = arith.constant 0 : index
    %c0_2 = arith.constant 0 : index
    %2 = vector.load %arg2[%c0_1, %c0_2] : memref<104x64xbf16, #tpu.memory_space<vmem>>, vector<104x64xbf16>
    %cst = arith.constant dense<0.000000e+00> : vector<128x64xf32>
    %3 = tpu.matmul %1, %2, %cst {dimension_numbers = #tpu.dot_dimension_numbers<[1], [0], [0], [1], [0, 0, 1, 1], [], []>} : vector<128x104xbf16>, vector<104x64xbf16>, vector<128x64xf32> -> vector<128x64xf32>
    %c0_3 = arith.constant 0 : index
    %c0_4 = arith.constant 0 : index
    %4 = vector.load %arg3[%c0_3, %c0_4] : memref<1x64xf32, #tpu.memory_space<vmem>>, vector<1x64xf32>
    %5 = vector.broadcast %4 : vector<1x64xf32> to vector<128x64xf32>
    %6 = arith.addf %3, %5 : vector<128x64xf32>
    %cst_5 = arith.constant 0.000000e+00 : f32
    %7 = vector.broadcast %cst_5 : f32 to vector<128x64xf32>
    %8 = arith.cmpf ogt, %6, %7 : vector<128x64xf32>
    %9 = math.exp %6 : vector<128x64xf32>
    %cst_6 = arith.constant 1.000000e+00 : f32
    %10 = vector.broadcast %cst_6 : f32 to vector<128x64xf32>
    %11 = arith.subf %9, %10 : vector<128x64xf32>
    %12 = arith.select %8, %6, %11 : vector<128x64xi1>, vector<128x64xf32>
    %13 = arith.truncf %12 : vector<128x64xf32> to vector<128x64xbf16>
    %14 = tpu.transpose %13, [1, 0] : vector<128x64xbf16> -> vector<64x128xbf16>
    %c0_7 = arith.constant 0 : index
    %c0_8 = arith.constant 0 : index
    %c0_9 = arith.constant 0 : index
    %15 = vector.load %arg4[%c0_7, %c0_8, %c0_9] : memref<4x64x64xbf16, #tpu.memory_space<vmem>>, vector<1x64x64xbf16>
    %16 = vector.shape_cast %15 : vector<1x64x64xbf16> to vector<64x64xbf16>
    %cst_10 = arith.constant dense<0.000000e+00> : vector<64x128xf32>
    %17 = tpu.matmul %16, %14, %cst_10 {dimension_numbers = #tpu.dot_dimension_numbers<[1], [0], [0], [1], [0, 0, 1, 1], [], []>} : vector<64x64xbf16>, vector<64x128xbf16>, vector<64x128xf32> -> vector<64x128xf32>
    %c0_11 = arith.constant 0 : index
    %c0_12 = arith.constant 0 : index
    %c0_13 = arith.constant 0 : index
    %18 = vector.load %arg5[%c0_11, %c0_12, %c0_13] : memref<4x64x1xf32, #tpu.memory_space<vmem>>, vector<1x64x1xf32>
    %19 = vector.shape_cast %18 : vector<1x64x1xf32> to vector<64x1xf32>
    %20 = vector.broadcast %19 : vector<64x1xf32> to vector<64x128xf32>
    %21 = arith.addf %17, %20 : vector<64x128xf32>
    %cst_14 = arith.constant 0.000000e+00 : f32
    %22 = vector.broadcast %cst_14 : f32 to vector<64x128xf32>
    %23 = arith.cmpf ogt, %21, %22 : vector<64x128xf32>
    %24 = math.exp %21 : vector<64x128xf32>
    %cst_15 = arith.constant 1.000000e+00 : f32
    %25 = vector.broadcast %cst_15 : f32 to vector<64x128xf32>
    %26 = arith.subf %24, %25 : vector<64x128xf32>
    %27 = arith.select %23, %21, %26 : vector<64x128xi1>, vector<64x128xf32>
    %28 = arith.truncf %27 : vector<64x128xf32> to vector<64x128xbf16>
    %c1 = arith.constant 1 : index
    %c0_16 = arith.constant 0 : index
    %c0_17 = arith.constant 0 : index
    %29 = vector.load %arg4[%c1, %c0_16, %c0_17] : memref<4x64x64xbf16, #tpu.memory_space<vmem>>, vector<1x64x64xbf16>
    %30 = vector.shape_cast %29 : vector<1x64x64xbf16> to vector<64x64xbf16>
    %cst_18 = arith.constant dense<0.000000e+00> : vector<64x128xf32>
    %31 = tpu.matmul %30, %28, %cst_18 {dimension_numbers = #tpu.dot_dimension_numbers<[1], [0], [0], [1], [0, 0, 1, 1], [], []>} : vector<64x64xbf16>, vector<64x128xbf16>, vector<64x128xf32> -> vector<64x128xf32>
    %c1_19 = arith.constant 1 : index
    %c0_20 = arith.constant 0 : index
    %c0_21 = arith.constant 0 : index
    %32 = vector.load %arg5[%c1_19, %c0_20, %c0_21] : memref<4x64x1xf32, #tpu.memory_space<vmem>>, vector<1x64x1xf32>
    %33 = vector.shape_cast %32 : vector<1x64x1xf32> to vector<64x1xf32>
    %34 = vector.broadcast %33 : vector<64x1xf32> to vector<64x128xf32>
    %35 = arith.addf %31, %34 : vector<64x128xf32>
    %cst_22 = arith.constant 0.000000e+00 : f32
    %36 = vector.broadcast %cst_22 : f32 to vector<64x128xf32>
    %37 = arith.cmpf ogt, %35, %36 : vector<64x128xf32>
    %38 = math.exp %35 : vector<64x128xf32>
    %cst_23 = arith.constant 1.000000e+00 : f32
    %39 = vector.broadcast %cst_23 : f32 to vector<64x128xf32>
    %40 = arith.subf %38, %39 : vector<64x128xf32>
    %41 = arith.select %37, %35, %40 : vector<64x128xi1>, vector<64x128xf32>
    %42 = arith.truncf %41 : vector<64x128xf32> to vector<64x128xbf16>
    %c2 = arith.constant 2 : index
    %c0_24 = arith.constant 0 : index
    %c0_25 = arith.constant 0 : index
    %43 = vector.load %arg4[%c2, %c0_24, %c0_25] : memref<4x64x64xbf16, #tpu.memory_space<vmem>>, vector<1x64x64xbf16>
    %44 = vector.shape_cast %43 : vector<1x64x64xbf16> to vector<64x64xbf16>
    %cst_26 = arith.constant dense<0.000000e+00> : vector<64x128xf32>
    %45 = tpu.matmul %44, %42, %cst_26 {dimension_numbers = #tpu.dot_dimension_numbers<[1], [0], [0], [1], [0, 0, 1, 1], [], []>} : vector<64x64xbf16>, vector<64x128xbf16>, vector<64x128xf32> -> vector<64x128xf32>
    %c2_27 = arith.constant 2 : index
    %c0_28 = arith.constant 0 : index
    %c0_29 = arith.constant 0 : index
    %46 = vector.load %arg5[%c2_27, %c0_28, %c0_29] : memref<4x64x1xf32, #tpu.memory_space<vmem>>, vector<1x64x1xf32>
    %47 = vector.shape_cast %46 : vector<1x64x1xf32> to vector<64x1xf32>
    %48 = vector.broadcast %47 : vector<64x1xf32> to vector<64x128xf32>
    %49 = arith.addf %45, %48 : vector<64x128xf32>
    %cst_30 = arith.constant 0.000000e+00 : f32
    %50 = vector.broadcast %cst_30 : f32 to vector<64x128xf32>
    %51 = arith.cmpf ogt, %49, %50 : vector<64x128xf32>
    %52 = math.exp %49 : vector<64x128xf32>
    %cst_31 = arith.constant 1.000000e+00 : f32
    %53 = vector.broadcast %cst_31 : f32 to vector<64x128xf32>
    %54 = arith.subf %52, %53 : vector<64x128xf32>
    %55 = arith.select %51, %49, %54 : vector<64x128xi1>, vector<64x128xf32>
    %56 = arith.truncf %55 : vector<64x128xf32> to vector<64x128xbf16>
    %c3 = arith.constant 3 : index
    %c0_32 = arith.constant 0 : index
    %c0_33 = arith.constant 0 : index
    %57 = vector.load %arg4[%c3, %c0_32, %c0_33] : memref<4x64x64xbf16, #tpu.memory_space<vmem>>, vector<1x64x64xbf16>
    %58 = vector.shape_cast %57 : vector<1x64x64xbf16> to vector<64x64xbf16>
    %cst_34 = arith.constant dense<0.000000e+00> : vector<64x128xf32>
    %59 = tpu.matmul %58, %56, %cst_34 {dimension_numbers = #tpu.dot_dimension_numbers<[1], [0], [0], [1], [0, 0, 1, 1], [], []>} : vector<64x64xbf16>, vector<64x128xbf16>, vector<64x128xf32> -> vector<64x128xf32>
    %c3_35 = arith.constant 3 : index
    %c0_36 = arith.constant 0 : index
    %c0_37 = arith.constant 0 : index
    %60 = vector.load %arg5[%c3_35, %c0_36, %c0_37] : memref<4x64x1xf32, #tpu.memory_space<vmem>>, vector<1x64x1xf32>
    %61 = vector.shape_cast %60 : vector<1x64x1xf32> to vector<64x1xf32>
    %62 = vector.broadcast %61 : vector<64x1xf32> to vector<64x128xf32>
    %63 = arith.addf %59, %62 : vector<64x128xf32>
    %cst_38 = arith.constant 0.000000e+00 : f32
    %64 = vector.broadcast %cst_38 : f32 to vector<64x128xf32>
    %65 = arith.cmpf ogt, %63, %64 : vector<64x128xf32>
    %66 = math.exp %63 : vector<64x128xf32>
    %cst_39 = arith.constant 1.000000e+00 : f32
    %67 = vector.broadcast %cst_39 : f32 to vector<64x128xf32>
    %68 = arith.subf %66, %67 : vector<64x128xf32>
    %69 = arith.select %65, %63, %68 : vector<64x128xi1>, vector<64x128xf32>
    %70 = arith.truncf %69 : vector<64x128xf32> to vector<64x128xbf16>
    %c0_40 = arith.constant 0 : index
    %c0_41 = arith.constant 0 : index
    %71 = vector.load %arg6[%c0_40, %c0_41] : memref<1x64xbf16, #tpu.memory_space<vmem>>, vector<1x64xbf16>
    %cst_42 = arith.constant dense<0.000000e+00> : vector<1x128xf32>
    %72 = tpu.matmul %71, %70, %cst_42 {dimension_numbers = #tpu.dot_dimension_numbers<[1], [0], [0], [1], [0, 0, 1, 1], [], []>} : vector<1x64xbf16>, vector<64x128xbf16>, vector<1x128xf32> -> vector<1x128xf32>
    %c0_43 = arith.constant 0 : index
    %c0_44 = arith.constant 0 : index
    %73 = vector.load %arg7[%c0_43, %c0_44] : memref<1x1xf32, #tpu.memory_space<vmem>>, vector<1x1xf32>
    %74 = vector.broadcast %73 : vector<1x1xf32> to vector<1x128xf32>
    %75 = arith.addf %72, %74 : vector<1x128xf32>
    %cst_45 = arith.constant 0.000000e+00 : f32
    %76 = vector.broadcast %cst_45 : f32 to vector<1x128xf32>
    %77 = arith.subf %76, %75 : vector<1x128xf32>
    %78 = math.exp %77 : vector<1x128xf32>
    %cst_46 = arith.constant 1.000000e+00 : f32
    %79 = vector.broadcast %cst_46 : f32 to vector<1x128xf32>
    %80 = arith.addf %79, %78 : vector<1x128xf32>
    %cst_47 = arith.constant 1.000000e+00 : f32
    %81 = vector.broadcast %cst_47 : f32 to vector<1x128xf32>
    %82 = arith.divf %81, %80 : vector<1x128xf32>
    %c0_48 = arith.constant 0 : index
    %c0_49 = arith.constant 0 : index
    %83 = vector.load %arg8[%c0_48, %c0_49] : memref<1x128xf32, #tpu.memory_space<vmem>>, vector<1x128xf32>
    tpu.vector_store %arg8[%c0_48, %c0_49], %82 {strides = array<i32>} : memref<1x128xf32, #tpu.memory_space<vmem>>, vector<1x128xf32>,
    return
  }
  func.func @transform_0(%arg0: i32) -> (i32, i32) {
    %c0_i32 = arith.constant 0 : i32
    %c0_i32_0 = arith.constant 0 : i32
    return %arg0, %c0_i32 : i32, i32
  }
  func.func @transform_1(%arg0: i32) -> (i32, i32) {
    %c0_i32 = arith.constant 0 : i32
    %c0_i32_0 = arith.constant 0 : i32
    %c0_i32_1 = arith.constant 0 : i32
    return %c0_i32, %c0_i32_0 : i32, i32
  }
  func.func @transform_2(%arg0: i32) -> (i32, i32) {
    %c0_i32 = arith.constant 0 : i32
    %c0_i32_0 = arith.constant 0 : i32
    %c0_i32_1 = arith.constant 0 : i32
    return %c0_i32, %c0_i32_0 : i32, i32
  }
  func.func @transform_3(%arg0: i32) -> (i32, i32, i32) {
    %c0_i32 = arith.constant 0 : i32
    %c0_i32_0 = arith.constant 0 : i32
    %c0_i32_1 = arith.constant 0 : i32
    %c0_i32_2 = arith.constant 0 : i32
    return %c0_i32, %c0_i32_0, %c0_i32_1 : i32, i32, i32
  }
  func.func @transform_4(%arg0: i32) -> (i32, i32, i32) {
    %c0_i32 = arith.constant 0 : i32
    %c0_i32_0 = arith.constant 0 : i32
    %c0_i32_1 = arith.constant 0 : i32
    %c0_i32_2 = arith.constant 0 : i32
    return %c0_i32, %c0_i32_0, %c0_i32_1 : i32, i32, i32
  }
  func.func @transform_5(%arg0: i32) -> (i32, i32) {
    %c0_i32 = arith.constant 0 : i32
    %c0_i32_0 = arith.constant 0 : i32
    %c0_i32_1 = arith.constant 0 : i32
    return %c0_i32, %c0_i32_0 : i32, i32
  }
  func.func @transform_6(%arg0: i32) -> (i32, i32) {
    %c0_i32 = arith.constant 0 : i32
    %c0_i32_0 = arith.constant 0 : i32
    %c0_i32_1 = arith.constant 0 : i32
    return %c0_i32, %c0_i32_0 : i32, i32
  }
  func.func @transform_7(%arg0: i32) -> (i32, i32) {
    %c0_i32 = arith.constant 0 : i32
    %c0_i32_0 = arith.constant 0 : i32
    return %c0_i32, %arg0 : i32, i32
  }
}

</mosaic_0001>

<llo_original>
// kernel: tpu_custom_call.1
$region0: #{tpu_custom_call.1}
  #allocation0 [shape = 'u32[]', space=smem, size = 0x4, offset = 0x4, fixed_abs, tag = 'smem constant byte address 0x4 - core index']
  #allocation1 [shape = 'u32[144,128]{1,0:T(1,128)}', space=vmem, size = 0x12000, scoped, tag = 'internal scratch']
  #allocation2 [shape = 'f32[1,1]{1,0:T(1,128)S(1)}', space=vmem, size = 0x200, scoped, tag = 'scoped memory for tpu_custom_call.1']
  %s0 = inlined_call_operand.vmem [shape: f32[128,104], index: 0, kind: input, shape index: {}]
  %s1 = inlined_call_operand.vmem [shape: bf16[104,64], index: 1, kind: input, shape index: {}]
  %s2 = inlined_call_operand.vmem [shape: f32[1,64], index: 2, kind: input, shape index: {}]
  %s3 = inlined_call_operand.vmem [shape: bf16[4,64,64], index: 3, kind: input, shape index: {}]
  %s4 = inlined_call_operand.vmem [shape: f32[4,64,1], index: 4, kind: input, shape index: {}]
  %s5 = inlined_call_operand.vmem [shape: bf16[1,64], index: 5, kind: input, shape index: {}]
  %s6 = inlined_call_operand.<no memory space> [shape: f32[1,1], index: 6, kind: input, shape index: {}]
  %s7 = inlined_call_operand.hbm [shape: f32[1,128], index: 7, kind: output, shape index: {}]
  %s8 = sld [smem:[#allocation0]]
  $region38: #{tpu_custom_call.1} parent=0
    _
  %s10 = ssub.s32 1, %s8
  %s11 = scalar_select 0, %s10, %s8
  %v12 = vstv %s6
  %13 = vst [vmem:[#allocation2] sm:$0x1] %v12
  $region1: #{tpu_custom_call.1} parent=0
    #allocation3 [shape = 'u8[512]{0}', space=vmem, size = 0x400, scoped, tag = 'output window, operand 0, single buffered']
    #allocation4 [shape = 's32[1]{0}', space=sflag, size = 0x4, scoped, tag = 'scoped memory for tpu_custom_call.1']
    %14 = vsyncpa [#allocation4], 0
    // Predicated region
    $region2: #{tpu_custom_call.1} parent=1 // pred_check
      _
    $region3: #{tpu_custom_call.1} parent=1 // pred_check_branch
      %16 = sbr.rel (0) target = $region5
    $region4: #{tpu_custom_call.1} parent=1 // pred_region
      _
    $region5: #{tpu_custom_call.1} parent=1 // pred_fallthru
      _
    // Predicated region
    $region6: #{tpu_custom_call.1} parent=1 // pred_check
      _
    $region7: #{tpu_custom_call.1} parent=1 // pred_check_branch
      %18 = sbr.rel (0) target = $region9
    $region8: #{tpu_custom_call.1} parent=1 // pred_region
      _
    $region9: #{tpu_custom_call.1} parent=1 // pred_fallthru
      _
    // Predicated region
    $region10: #{tpu_custom_call.1} parent=1 // pred_check
      _
    $region11: #{tpu_custom_call.1} parent=1 // pred_check_branch
      %20 = sbr.rel (0) target = $region13
    $region12: #{tpu_custom_call.1} parent=1 // pred_region
      _
    $region13: #{tpu_custom_call.1} parent=1 // pred_fallthru
      _
    // Predicated region
    $region14: #{tpu_custom_call.1} parent=1 // pred_check
      _
    $region15: #{tpu_custom_call.1} parent=1 // pred_check_branch
      %22 = sbr.rel (0) target = $region17
    $region16: #{tpu_custom_call.1} parent=1 // pred_region
      _
    $region17: #{tpu_custom_call.1} parent=1 // pred_fallthru
      _
    // Predicated region
    $region18: #{tpu_custom_call.1} parent=1 // pred_check
      _
    $region19: #{tpu_custom_call.1} parent=1 // pred_check_branch
      %24 = sbr.rel (0) target = $region21
    $region20: #{tpu_custom_call.1} parent=1 // pred_region
      _
    $region21: #{tpu_custom_call.1} parent=1 // pred_fallthru
      _
    // Predicated region
    $region22: #{tpu_custom_call.1} parent=1 // pred_check
      _
    $region23: #{tpu_custom_call.1} parent=1 // pred_check_branch
      %26 = sbr.rel (0) target = $region25
    $region24: #{tpu_custom_call.1} parent=1 // pred_region
      _
    $region25: #{tpu_custom_call.1} parent=1 // pred_fallthru
      _
    // Predicated region
    $region26: #{tpu_custom_call.1} parent=1 // pred_check
      _
    $region27: #{tpu_custom_call.1} parent=1 // pred_check_branch
      %28 = sbr.rel (0) target = $region29
    $region28: #{tpu_custom_call.1} parent=1 // pred_region
      _
    $region29: #{tpu_custom_call.1} parent=1 // pred_fallthru
      _
    %v30 = vld [vmem:[%s0] sm:$0xff]
    %v31 = vld [vmem:[%s0 + $0x8] sm:$0xff]
    %v32 = vld [vmem:[%s0 + $0x10] sm:$0xff]
    %v33 = vld [vmem:[%s0 + $0x18] sm:$0xff]
    %v34 = vld [vmem:[%s0 + $0x20] sm:$0xff]
    %v35 = vld [vmem:[%s0 + $0x28] sm:$0xff]
    %v36 = vld [vmem:[%s0 + $0x30] sm:$0xff]
    %v37 = vld [vmem:[%s0 + $0x38] sm:$0xff]
    %v38 = vld [vmem:[%s0 + $0x40] sm:$0xff]
    %v39 = vld [vmem:[%s0 + $0x48] sm:$0xff]
    %v40 = vld [vmem:[%s0 + $0x50] sm:$0xff]
    %v41 = vld [vmem:[%s0 + $0x58] sm:$0xff]
    %v42 = vld [vmem:[%s0 + $0x60] sm:$0xff]
    %v43 = vld [vmem:[%s0 + $0x68] sm:$0xff]
    %v44 = vld [vmem:[%s0 + $0x70] sm:$0xff]
    %v45 = vld [vmem:[%s0 + $0x78] sm:$0xff]
    %v46 = vpack.c.bf16 %v31, %v30
    %v47 = vpack.c.bf16 %v33, %v32
    %v48 = vpack.c.bf16 %v35, %v34
    %v49 = vpack.c.bf16 %v37, %v36
    %v50 = vpack.c.bf16 %v39, %v38
    %v51 = vpack.c.bf16 %v41, %v40
    %v52 = vpack.c.bf16 %v43, %v42
    %v53 = vpack.c.bf16 %v45, %v44
    %v54 = vld [vmem:[%s1] sm:$0xf]
    %v55 = vld [vmem:[%s1 + $0x4] sm:$0xf]
    %v56 = vld [vmem:[%s1 + $0x8] sm:$0xf]
    %v57 = vld [vmem:[%s1 + $0xc] sm:$0xf]
    %v58 = vld [vmem:[%s1 + $0x10] sm:$0xf]
    %v59 = vld [vmem:[%s1 + $0x14] sm:$0xf]
    %v60 = vld [vmem:[%s1 + $0x18] sm:$0xf]
    %v61 = vld [vmem:[%s1 + $0x1c] sm:$0xf]
    %v62 = vld [vmem:[%s1 + $0x20] sm:$0xf]
    %v63 = vld [vmem:[%s1 + $0x24] sm:$0xf]
    %v64 = vld [vmem:[%s1 + $0x28] sm:$0xf]
    %v65 = vld [vmem:[%s1 + $0x2c] sm:$0xf]
    %v66 = vld [vmem:[%s1 + $0x30] sm:$0xf]
    %v67 = vld [vmem:[%s2] sm:$0x1]
    %v69 = vlaneseq
    %v70 = vshrl.u32 %v69, 7
    %v71 = vsub.s32 0, %v70
    %v72 = vrot.slane %v67, %v71
    %v87 = vunpack.c.l.b16 %v54
    %v88 = vunpack.c.l.b16 %v55
    %v89 = vunpack.c.l.b16 %v56
    %v90 = vunpack.c.l.b16 %v57
    %v91 = vunpack.c.l.b16 %v58
    %v92 = vunpack.c.l.b16 %v59
    %v93 = vunpack.c.l.b16 %v60
    %v94 = vunpack.c.l.b16 %v61
    %v95 = vunpack.c.l.b16 %v62
    %v96 = vunpack.c.l.b16 %v63
    %v97 = vunpack.c.l.b16 %v64
    %v98 = vunpack.c.l.b16 %v65
    %v99 = vunpack.c.l.b16 %v66
    %v100 = vpack.c.b16 %v88, %v87
    %v101 = vpack.c.b16 %v90, %v89
    %v102 = vpack.c.b16 %v92, %v91
    %v103 = vpack.c.b16 %v94, %v93
    %v104 = vpack.c.b16 %v96, %v95
    %v105 = vpack.c.b16 %v98, %v97
    %v106 = vpack.c.b16 %v99, %v99
    %vm113 = vcmask 850944
    %v115 = vsel %vm113, %v46, 0
    %v118 = vsel %vm113, %v47, 0
    %v121 = vsel %vm113, %v48, 0
    %v124 = vsel %vm113, %v49, 0
    %v127 = vsel %vm113, %v50, 0
    %v130 = vsel %vm113, %v51, 0
    %v133 = vsel %vm113, %v52, 0
    %v136 = vsel %vm113, %v53, 0
    %vm138 = vcmask 1043456
    %v140 = vsel %vm138, %v106, 0
    %142 = vmatprep.subr.bf16.mxu0 0
    %143 = vmatpush1.bf16.msra.mxu0 %v100
    %144 = vmatprep.subr.bf16.mxu0 0
    %145 = vmatpush1.bf16.msra.mxu0 %v101
    %146 = vmatprep.subr.bf16.mxu0 0
    %147 = vmatpush1.bf16.msra.mxu0 %v102
    %148 = vmatprep.subr.bf16.mxu0 0
    %149 = vmatpush1.bf16.msra.mxu0 %v103
    %150 = vmatprep.subr.bf16.mxu0 0
    %151 = vmatpush1.bf16.msra.mxu0 %v104
    %152 = vmatprep.subr.bf16.mxu0 0
    %153 = vmatpush1.bf16.msra.mxu0 %v105
    %154 = vmatprep.subr.bf16.mxu0 0
    %155 = vmatpush1.bf16.msra.mxu0 %v140
    %156 = vmatprep.subr.bf16.mxu0 0
    %157 = vmatpush1.bf16.msra.mxu0 0
    %158 = vmatprep.subr.bf16.mxu0 0
    %159 = vmatpush1.bf16.msra.mxu0 0
    %160 = vmatprep.subr.bf16.mxu0 0
    %161 = vmatpush1.bf16.msra.mxu0 0
    %162 = vmatprep.subr.bf16.mxu0 0
    %163 = vmatpush1.bf16.msra.mxu0 0
    %164 = vmatprep.subr.bf16.mxu0 0
    %165 = vmatpush1.bf16.msra.mxu0 0
    %166 = vmatprep.subr.bf16.mxu0 0
    %167 = vmatpush1.bf16.msra.mxu0 0
    %168 = vmatprep.subr.bf16.mxu0 0
    %169 = vmatpush1.bf16.msra.mxu0 0
    %170 = vmatprep.subr.bf16.mxu0 0
    %171 = vmatpush1.bf16.msra.mxu0 0
    %172 = vmatprep.subr.bf16.mxu0 0
    %173 = vmatpush1.bf16.msra.mxu0 0
    %174 = vmatprep.mubr.bf16.mxu0 0
    %175 = vmatmul.mubr.bf16.gmra.mrb[0].mxu0 %v115
    %v176 = vpop.f32.mrb[0].mxu0
    %v177 = vadd.f32 %v72, %v176
    %v178 = vpop.f32.mrb[0].mxu0
    %v179 = vpop.f32.mrb[0].mxu0
    %v180 = vadd.f32 %v72, %v179
    %v181 = vpop.f32.mrb[0].mxu0
    %182 = vmatprep.mubr.bf16.mxu0 0
    %183 = vmatmul.mubr.bf16.gmra.mrb[0].mxu0 %v118
    %v184 = vpop.f32.mrb[0].mxu0
    %v185 = vadd.f32 %v72, %v184
    %v186 = vpop.f32.mrb[0].mxu0
    %v187 = vpop.f32.mrb[0].mxu0
    %v188 = vadd.f32 %v72, %v187
    %v189 = vpop.f32.mrb[0].mxu0
    %190 = vmatprep.mubr.bf16.mxu0 0
    %191 = vmatmul.mubr.bf16.gmra.mrb[0].mxu0 %v121
    %v192 = vpop.f32.mrb[0].mxu0
    %v193 = vadd.f32 %v72, %v192
    %v194 = vpop.f32.mrb[0].mxu0
    %v195 = vpop.f32.mrb[0].mxu0
    %v196 = vadd.f32 %v72, %v195
    %v197 = vpop.f32.mrb[0].mxu0
    %198 = vmatprep.mubr.bf16.mxu0 0
    %199 = vmatmul.mubr.bf16.gmra.mrb[0].mxu0 %v124
    %v200 = vpop.f32.mrb[0].mxu0
    %v201 = vadd.f32 %v72, %v200
    %v202 = vpop.f32.mrb[0].mxu0
    %v203 = vpop.f32.mrb[0].mxu0
    %v204 = vadd.f32 %v72, %v203
    %v205 = vpop.f32.mrb[0].mxu0
    %206 = vmatprep.mubr.bf16.mxu0 0
    %207 = vmatmul.mubr.bf16.gmra.mrb[0].mxu0 %v127
    %v208 = vpop.f32.mrb[0].mxu0
    %v209 = vadd.f32 %v72, %v208
    %v210 = vpop.f32.mrb[0].mxu0
    %v211 = vpop.f32.mrb[0].mxu0
    %v212 = vadd.f32 %v72, %v211
    %v213 = vpop.f32.mrb[0].mxu0
    %214 = vmatprep.mubr.bf16.mxu0 0
    %215 = vmatmul.mubr.bf16.gmra.mrb[0].mxu0 %v130
    %v216 = vpop.f32.mrb[0].mxu0
    %v217 = vadd.f32 %v72, %v216
    %v218 = vpop.f32.mrb[0].mxu0
    %v219 = vpop.f32.mrb[0].mxu0
    %v220 = vadd.f32 %v72, %v219
    %v221 = vpop.f32.mrb[0].mxu0
    %222 = vmatprep.mubr.bf16.mxu0 0
    %223 = vmatmul.mubr.bf16.gmra.mrb[0].mxu0 %v133
    %v224 = vpop.f32.mrb[0].mxu0
    %v225 = vadd.f32 %v72, %v224
    %v226 = vpop.f32.mrb[0].mxu0
    %v227 = vpop.f32.mrb[0].mxu0
    %v228 = vadd.f32 %v72, %v227
    %v229 = vpop.f32.mrb[0].mxu0
    %230 = vmatprep.mubr.bf16.mxu0 0
    %231 = vmatmul.mubr.bf16.gmra.mrb[0].mxu0 %v136
    %v232 = vpop.f32.mrb[0].mxu0
    %v233 = vadd.f32 %v72, %v232
    %v234 = vpop.f32.mrb[0].mxu0
    %v235 = vpop.f32.mrb[0].mxu0
    %v236 = vadd.f32 %v72, %v235
    %v237 = vpop.f32.mrb[0].mxu0
    %238 = vdwg.mxu0
    %vm239 = vcmp.gt.f32.partialorder %v177, 0.0
    %vm240 = vcmp.gt.f32.partialorder %v180, 0.0
    %vm241 = vcmp.gt.f32.partialorder %v185, 0.0
    %vm242 = vcmp.gt.f32.partialorder %v188, 0.0
    %vm243 = vcmp.gt.f32.partialorder %v193, 0.0
    %vm244 = vcmp.gt.f32.partialorder %v196, 0.0
    %vm245 = vcmp.gt.f32.partialorder %v201, 0.0
    %vm246 = vcmp.gt.f32.partialorder %v204, 0.0
    %vm247 = vcmp.gt.f32.partialorder %v209, 0.0
    %vm248 = vcmp.gt.f32.partialorder %v212, 0.0
    %vm249 = vcmp.gt.f32.partialorder %v217, 0.0
    %vm250 = vcmp.gt.f32.partialorder %v220, 0.0
    %vm251 = vcmp.gt.f32.partialorder %v225, 0.0
    %vm252 = vcmp.gt.f32.partialorder %v228, 0.0
    %vm253 = vcmp.gt.f32.partialorder %v233, 0.0
    %vm254 = vcmp.gt.f32.partialorder %v236, 0.0
    %v255 = vmul.f32 %v177, 1.442695
    %v256 = vpow.pop %v255
    %v257 = vmul.f32 %v180, 1.442695
    %v258 = vpow.pop %v257
    %v259 = vmul.f32 %v185, 1.442695
    %v260 = vpow.pop %v259
    %v261 = vmul.f32 %v188, 1.442695
    %v262 = vpow.pop %v261
    %v263 = vmul.f32 %v193, 1.442695
    %v264 = vpow.pop %v263
    %v265 = vmul.f32 %v196, 1.442695
    %v266 = vpow.pop %v265
    %v267 = vmul.f32 %v201, 1.442695
    %v268 = vpow.pop %v267
    %v269 = vmul.f32 %v204, 1.442695
    %v270 = vpow.pop %v269
    %v271 = vmul.f32 %v209, 1.442695
    %v272 = vpow.pop %v271
    %v273 = vmul.f32 %v212, 1.442695
    %v274 = vpow.pop %v273
    %v275 = vmul.f32 %v217, 1.442695
    %v276 = vpow.pop %v275
    %v277 = vmul.f32 %v220, 1.442695
    %v278 = vpow.pop %v277
    %v279 = vmul.f32 %v225, 1.442695
    %v280 = vpow.pop %v279
    %v281 = vmul.f32 %v228, 1.442695
    %v282 = vpow.pop %v281
    %v283 = vmul.f32 %v233, 1.442695
    %v284 = vpow.pop %v283
    %v285 = vmul.f32 %v236, 1.442695
    %v286 = vpow.pop %v285
    %v287 = vsub.f32 %v256, 1.0
    %v288 = vsub.f32 %v258, 1.0
    %v289 = vsub.f32 %v260, 1.0
    %v290 = vsub.f32 %v262, 1.0
    %v291 = vsub.f32 %v264, 1.0
    %v292 = vsub.f32 %v266, 1.0
    %v293 = vsub.f32 %v268, 1.0
    %v294 = vsub.f32 %v270, 1.0
    %v295 = vsub.f32 %v272, 1.0
    %v296 = vsub.f32 %v274, 1.0
    %v297 = vsub.f32 %v276, 1.0
    %v298 = vsub.f32 %v278, 1.0
    %v299 = vsub.f32 %v280, 1.0
    %v300 = vsub.f32 %v282, 1.0
    %v301 = vsub.f32 %v284, 1.0
    %v302 = vsub.f32 %v286, 1.0
    %v303 = vsel %vm239, %v177, %v287
    %v304 = vsel %vm240, %v180, %v288
    %v305 = vsel %vm241, %v185, %v289
    %v306 = vsel %vm242, %v188, %v290
    %v307 = vsel %vm243, %v193, %v291
    %v308 = vsel %vm244, %v196, %v292
    %v309 = vsel %vm245, %v201, %v293
    %v310 = vsel %vm246, %v204, %v294
    %v311 = vsel %vm247, %v209, %v295
    %v312 = vsel %vm248, %v212, %v296
    %v313 = vsel %vm249, %v217, %v297
    %v314 = vsel %vm250, %v220, %v298
    %v315 = vsel %vm251, %v225, %v299
    %v316 = vsel %vm252, %v228, %v300
    %v317 = vsel %vm253, %v233, %v301
    %v318 = vsel %vm254, %v236, %v302
    %v319 = vpack.c.bf16 %v304, %v303
    %v320 = vpack.c.bf16 %v306, %v305
    %v321 = vpack.c.bf16 %v308, %v307
    %v322 = vpack.c.bf16 %v310, %v309
    %v323 = vpack.c.bf16 %v312, %v311
    %v324 = vpack.c.bf16 %v314, %v313
    %v325 = vpack.c.bf16 %v316, %v315
    %v326 = vpack.c.bf16 %v318, %v317
    %v327 = vld [vmem:[%s3] sm:$0xf]
    %v328 = vld [vmem:[%s3 + $0x4] sm:$0xf]
    %v329 = vld [vmem:[%s3 + $0x8] sm:$0xf]
    %v330 = vld [vmem:[%s3 + $0xc] sm:$0xf]
    %v331 = vld [vmem:[%s3 + $0x10] sm:$0xf]
    %v332 = vld [vmem:[%s3 + $0x14] sm:$0xf]
    %v333 = vld [vmem:[%s3 + $0x18] sm:$0xf]
    %v334 = vld [vmem:[%s3 + $0x1c] sm:$0xf]
    %v335 = vld [vmem:[%s4] sm:$0xff]
    %v336 = vld [vmem:[%s4 + $0x8] sm:$0xff]
    %v337 = vld [vmem:[%s4 + $0x10] sm:$0xff]
    %v338 = vld [vmem:[%s4 + $0x18] sm:$0xff]
    %v339 = vld [vmem:[%s4 + $0x20] sm:$0xff]
    %v340 = vld [vmem:[%s4 + $0x28] sm:$0xff]
    %v341 = vld [vmem:[%s4 + $0x30] sm:$0xff]
    %v342 = vld [vmem:[%s4 + $0x38] sm:$0xff]
    %344 = vset.pattern.permute.xlu0 0
    %345 = vperm.xlu0 %344, %v335
    %v346 = vpop.permute.xlu0 %345
    %349 = vset.pattern.permute.xlu0 0
    %350 = vperm.xlu0 %349, %v336
    %v351 = vpop.permute.xlu0 %350
    %354 = vset.pattern.permute.xlu0 0
    %355 = vperm.xlu0 %354, %v337
    %v356 = vpop.permute.xlu0 %355
    %359 = vset.pattern.permute.xlu0 0
    %360 = vperm.xlu0 %359, %v338
    %v361 = vpop.permute.xlu0 %360
    %364 = vset.pattern.permute.xlu0 0
    %365 = vperm.xlu0 %364, %v339
    %v366 = vpop.permute.xlu0 %365
    %369 = vset.pattern.permute.xlu0 0
    %370 = vperm.xlu0 %369, %v340
    %v371 = vpop.permute.xlu0 %370
    %374 = vset.pattern.permute.xlu0 0
    %375 = vperm.xlu0 %374, %v341
    %v376 = vpop.permute.xlu0 %375
    %379 = vset.pattern.permute.xlu0 0
    %380 = vperm.xlu0 %379, %v342
    %v381 = vpop.permute.xlu0 %380
    %v391 = vunpack.c.l.b16 %v327
    %v392 = vunpack.c.l.b16 %v328
    %v393 = vunpack.c.l.b16 %v329
    %v394 = vunpack.c.l.b16 %v330
    %v395 = vunpack.c.l.b16 %v331
    %v396 = vunpack.c.l.b16 %v332
    %v397 = vunpack.c.l.b16 %v333
    %v398 = vunpack.c.l.b16 %v334
    %v399 = vpack.c.b16 %v392, %v391
    %v400 = vpack.c.b16 %v394, %v393
    %v401 = vpack.c.b16 %v396, %v395
    %v402 = vpack.c.b16 %v398, %v397
    %vm403 = vcmask 523264
    %v405 = vsel %vm403, %v399, 0
    %v408 = vsel %vm403, %v400, 0
    %v411 = vsel %vm403, %v401, 0
    %v414 = vsel %vm403, %v402, 0
    %v417 = vsel %vm403, %v319, 0
    %v420 = vsel %vm403, %v320, 0
    %v423 = vsel %vm403, %v321, 0
    %v426 = vsel %vm403, %v322, 0
    %v429 = vsel %vm403, %v323, 0
    %v432 = vsel %vm403, %v324, 0
    %v435 = vsel %vm403, %v325, 0
    %v438 = vsel %vm403, %v326, 0
    %440 = vmatprep.subr.bf16.mxu0 0
    %441 = vmatpush1.bf16.xpose.msra.mxu0 %v417
    %442 = vmatprep.subr.bf16.mxu0 0
    %443 = vmatpush1.bf16.xpose.msra.mxu0 %v420
    %444 = vmatprep.subr.bf16.mxu0 0
    %445 = vmatpush1.bf16.xpose.msra.mxu0 %v423
    %446 = vmatprep.subr.bf16.mxu0 0
    %447 = vmatpush1.bf16.xpose.msra.mxu0 %v426
    %448 = vmatprep.subr.bf16.mxu0 0
    %449 = vmatpush1.bf16.xpose.msra.mxu0 %v429
    %450 = vmatprep.subr.bf16.mxu0 0
    %451 = vmatpush1.bf16.xpose.msra.mxu0 %v432
    %452 = vmatprep.subr.bf16.mxu0 0
    %453 = vmatpush1.bf16.xpose.msra.mxu0 %v435
    %454 = vmatprep.subr.bf16.mxu0 0
    %455 = vmatpush1.bf16.xpose.msra.mxu0 %v438
    %456 = vmatprep.subr.bf16.mxu0 0
    %457 = vmatpush1.bf16.xpose.msra.mxu0 0
    %458 = vmatprep.subr.bf16.mxu0 0
    %459 = vmatpush1.bf16.xpose.msra.mxu0 0
    %460 = vmatprep.subr.bf16.mxu0 0
    %461 = vmatpush1.bf16.xpose.msra.mxu0 0
    %462 = vmatprep.subr.bf16.mxu0 0
    %463 = vmatpush1.bf16.xpose.msra.mxu0 0
    %464 = vmatprep.subr.bf16.mxu0 0
    %465 = vmatpush1.bf16.xpose.msra.mxu0 0
    %466 = vmatprep.subr.bf16.mxu0 0
    %467 = vmatpush1.bf16.xpose.msra.mxu0 0
    %468 = vmatprep.subr.bf16.mxu0 0
    %469 = vmatpush1.bf16.xpose.msra.mxu0 0
    %470 = vmatprep.subr.bf16.mxu0 0
    %471 = vmatpush1.bf16.xpose.msra.mxu0 0
    %472 = vmatprep.mubr.bf16.mxu0 0
    %473 = vmatmul.mubr.bf16.gmra.mrb[0].mxu0 %v405
    %v474 = vpop.f32.mrb[0].mxu0
    %v475 = vadd.f32 %v346, %v474
    %v476 = vpop.f32.mrb[0].mxu0
    %v477 = vpop.f32.mrb[0].mxu0
    %v478 = vadd.f32 %v351, %v477
    %v479 = vpop.f32.mrb[0].mxu0
    %480 = vmatprep.mubr.bf16.mxu0 0
    %481 = vmatmul.mubr.bf16.gmra.mrb[0].mxu0 %v408
    %v482 = vpop.f32.mrb[0].mxu0
    %v483 = vadd.f32 %v356, %v482
    %v484 = vpop.f32.mrb[0].mxu0
    %v485 = vpop.f32.mrb[0].mxu0
    %v486 = vadd.f32 %v361, %v485
    %v487 = vpop.f32.mrb[0].mxu0
    %488 = vmatprep.mubr.bf16.mxu0 0
    %489 = vmatmul.mubr.bf16.gmra.mrb[0].mxu0 %v411
    %v490 = vpop.f32.mrb[0].mxu0
    %v491 = vadd.f32 %v366, %v490
    %v492 = vpop.f32.mrb[0].mxu0
    %v493 = vpop.f32.mrb[0].mxu0
    %v494 = vadd.f32 %v371, %v493
    %v495 = vpop.f32.mrb[0].mxu0
    %496 = vmatprep.mubr.bf16.mxu0 0
    %497 = vmatmul.mubr.bf16.gmra.mrb[0].mxu0 %v414
    %v498 = vpop.f32.mrb[0].mxu0
    %v499 = vadd.f32 %v376, %v498
    %v500 = vpop.f32.mrb[0].mxu0
    %v501 = vpop.f32.mrb[0].mxu0
    %v502 = vadd.f32 %v381, %v501
    %v503 = vpop.f32.mrb[0].mxu0
    %504 = vdwg.mxu0
    %vm505 = vcmp.gt.f32.partialorder %v475, 0.0
    %vm506 = vcmp.gt.f32.partialorder %v478, 0.0
    %vm507 = vcmp.gt.f32.partialorder %v483, 0.0
    %vm508 = vcmp.gt.f32.partialorder %v486, 0.0
    %vm509 = vcmp.gt.f32.partialorder %v491, 0.0
    %vm510 = vcmp.gt.f32.partialorder %v494, 0.0
    %vm511 = vcmp.gt.f32.partialorder %v499, 0.0
    %vm512 = vcmp.gt.f32.partialorder %v502, 0.0
    %v513 = vmul.f32 %v475, 1.442695
    %v514 = vpow.pop %v513
    %v515 = vmul.f32 %v478, 1.442695
    %v516 = vpow.pop %v515
    %v517 = vmul.f32 %v483, 1.442695
    %v518 = vpow.pop %v517
    %v519 = vmul.f32 %v486, 1.442695
    %v520 = vpow.pop %v519
    %v521 = vmul.f32 %v491, 1.442695
    %v522 = vpow.pop %v521
    %v523 = vmul.f32 %v494, 1.442695
    %v524 = vpow.pop %v523
    %v525 = vmul.f32 %v499, 1.442695
    %v526 = vpow.pop %v525
    %v527 = vmul.f32 %v502, 1.442695
    %v528 = vpow.pop %v527
    %v529 = vsub.f32 %v514, 1.0
    %v530 = vsub.f32 %v516, 1.0
    %v531 = vsub.f32 %v518, 1.0
    %v532 = vsub.f32 %v520, 1.0
    %v533 = vsub.f32 %v522, 1.0
    %v534 = vsub.f32 %v524, 1.0
    %v535 = vsub.f32 %v526, 1.0
    %v536 = vsub.f32 %v528, 1.0
    %v537 = vsel %vm505, %v475, %v529
    %v538 = vsel %vm506, %v478, %v530
    %v539 = vsel %vm507, %v483, %v531
    %v540 = vsel %vm508, %v486, %v532
    %v541 = vsel %vm509, %v491, %v533
    %v542 = vsel %vm510, %v494, %v534
    %v543 = vsel %vm511, %v499, %v535
    %v544 = vsel %vm512, %v502, %v536
    %v545 = vpack.c.bf16 %v538, %v537
    %v546 = vpack.c.bf16 %v540, %v539
    %v547 = vpack.c.bf16 %v542, %v541
    %v548 = vpack.c.bf16 %v544, %v543
    %s549 = scalar_lea.vmem %s3, 32
    %v550 = vld [vmem:[%s549] sm:$0xf]
    %v551 = vld [vmem:[%s549 + $0x4] sm:$0xf]
    %v552 = vld [vmem:[%s549 + $0x8] sm:$0xf]
    %v553 = vld [vmem:[%s549 + $0xc] sm:$0xf]
    %v554 = vld [vmem:[%s549 + $0x10] sm:$0xf]
    %v555 = vld [vmem:[%s549 + $0x14] sm:$0xf]
    %v556 = vld [vmem:[%s549 + $0x18] sm:$0xf]
    %v557 = vld [vmem:[%s549 + $0x1c] sm:$0xf]
    %s558 = scalar_lea.vmem %s4, 64
    %v559 = vld [vmem:[%s558] sm:$0xff]
    %v560 = vld [vmem:[%s558 + $0x8] sm:$0xff]
    %v561 = vld [vmem:[%s558 + $0x10] sm:$0xff]
    %v562 = vld [vmem:[%s558 + $0x18] sm:$0xff]
    %v563 = vld [vmem:[%s558 + $0x20] sm:$0xff]
    %v564 = vld [vmem:[%s558 + $0x28] sm:$0xff]
    %v565 = vld [vmem:[%s558 + $0x30] sm:$0xff]
    %v566 = vld [vmem:[%s558 + $0x38] sm:$0xff]
    %568 = vset.pattern.permute.xlu0 0
    %569 = vperm.xlu0 %568, %v559
    %v570 = vpop.permute.xlu0 %569
    %573 = vset.pattern.permute.xlu0 0
    %574 = vperm.xlu0 %573, %v560
    %v575 = vpop.permute.xlu0 %574
    %578 = vset.pattern.permute.xlu0 0
    %579 = vperm.xlu0 %578, %v561
    %v580 = vpop.permute.xlu0 %579
    %583 = vset.pattern.permute.xlu0 0
    %584 = vperm.xlu0 %583, %v562
    %v585 = vpop.permute.xlu0 %584
    %588 = vset.pattern.permute.xlu0 0
    %589 = vperm.xlu0 %588, %v563
    %v590 = vpop.permute.xlu0 %589
    %593 = vset.pattern.permute.xlu0 0
    %594 = vperm.xlu0 %593, %v564
    %v595 = vpop.permute.xlu0 %594
    %598 = vset.pattern.permute.xlu0 0
    %599 = vperm.xlu0 %598, %v565
    %v600 = vpop.permute.xlu0 %599
    %603 = vset.pattern.permute.xlu0 0
    %604 = vperm.xlu0 %603, %v566
    %v605 = vpop.permute.xlu0 %604
    %v615 = vunpack.c.l.b16 %v550
    %v616 = vunpack.c.l.b16 %v551
    %v617 = vunpack.c.l.b16 %v552
    %v618 = vunpack.c.l.b16 %v553
    %v619 = vunpack.c.l.b16 %v554
    %v620 = vunpack.c.l.b16 %v555
    %v621 = vunpack.c.l.b16 %v556
    %v622 = vunpack.c.l.b16 %v557
    %v623 = vpack.c.b16 %v616, %v615
    %v624 = vpack.c.b16 %v618, %v617
    %v625 = vpack.c.b16 %v620, %v619
    %v626 = vpack.c.b16 %v622, %v621
    %v628 = vsel %vm403, %v623, 0
    %v631 = vsel %vm403, %v624, 0
    %v634 = vsel %vm403, %v625, 0
    %v637 = vsel %vm403, %v626, 0
    %639 = vmatprep.subr.bf16.mxu0 0
    %640 = vmatpush1.bf16.msra.mxu0 %v545
    %641 = vmatprep.subr.bf16.mxu0 0
    %642 = vmatpush1.bf16.msra.mxu0 %v546
    %643 = vmatprep.subr.bf16.mxu0 0
    %644 = vmatpush1.bf16.msra.mxu0 %v547
    %645 = vmatprep.subr.bf16.mxu0 0
    %646 = vmatpush1.bf16.msra.mxu0 %v548
    %647 = vmatprep.subr.bf16.mxu0 0
    %648 = vmatpush1.bf16.msra.mxu0 0
    %649 = vmatprep.subr.bf16.mxu0 0
    %650 = vmatpush1.bf16.msra.mxu0 0
    %651 = vmatprep.subr.bf16.mxu0 0
    %652 = vmatpush1.bf16.msra.mxu0 0
    %653 = vmatprep.subr.bf16.mxu0 0
    %654 = vmatpush1.bf16.msra.mxu0 0
    %655 = vmatprep.subr.bf16.mxu0 0
    %656 = vmatpush1.bf16.msra.mxu0 0
    %657 = vmatprep.subr.bf16.mxu0 0
    %658 = vmatpush1.bf16.msra.mxu0 0
    %659 = vmatprep.subr.bf16.mxu0 0
    %660 = vmatpush1.bf16.msra.mxu0 0
    %661 = vmatprep.subr.bf16.mxu0 0
    %662 = vmatpush1.bf16.msra.mxu0 0
    %663 = vmatprep.subr.bf16.mxu0 0
    %664 = vmatpush1.bf16.msra.mxu0 0
    %665 = vmatprep.subr.bf16.mxu0 0
    %666 = vmatpush1.bf16.msra.mxu0 0
    %667 = vmatprep.subr.bf16.mxu0 0
    %668 = vmatpush1.bf16.msra.mxu0 0
    %669 = vmatprep.subr.bf16.mxu0 0
    %670 = vmatpush1.bf16.msra.mxu0 0
    %671 = vmatprep.mubr.bf16.mxu0 0
    %672 = vmatmul.mubr.bf16.gmra.mrb[0].mxu0 %v628
    %v673 = vpop.f32.mrb[0].mxu0
    %v674 = vadd.f32 %v570, %v673
    %v675 = vpop.f32.mrb[0].mxu0
    %v676 = vpop.f32.mrb[0].mxu0
    %v677 = vadd.f32 %v575, %v676
    %v678 = vpop.f32.mrb[0].mxu0
    %679 = vmatprep.mubr.bf16.mxu0 0
    %680 = vmatmul.mubr.bf16.gmra.mrb[0].mxu0 %v631
    %v681 = vpop.f32.mrb[0].mxu0
    %v682 = vadd.f32 %v580, %v681
    %v683 = vpop.f32.mrb[0].mxu0
    %v684 = vpop.f32.mrb[0].mxu0
    %v685 = vadd.f32 %v585, %v684
    %v686 = vpop.f32.mrb[0].mxu0
    %687 = vmatprep.mubr.bf16.mxu0 0
    %688 = vmatmul.mubr.bf16.gmra.mrb[0].mxu0 %v634
    %v689 = vpop.f32.mrb[0].mxu0
    %v690 = vadd.f32 %v590, %v689
    %v691 = vpop.f32.mrb[0].mxu0
    %v692 = vpop.f32.mrb[0].mxu0
    %v693 = vadd.f32 %v595, %v692
    %v694 = vpop.f32.mrb[0].mxu0
    %695 = vmatprep.mubr.bf16.mxu0 0
    %696 = vmatmul.mubr.bf16.gmra.mrb[0].mxu0 %v637
    %v697 = vpop.f32.mrb[0].mxu0
    %v698 = vadd.f32 %v600, %v697
    %v699 = vpop.f32.mrb[0].mxu0
    %v700 = vpop.f32.mrb[0].mxu0
    %v701 = vadd.f32 %v605, %v700
    %v702 = vpop.f32.mrb[0].mxu0
    %703 = vdwg.mxu0
    %vm704 = vcmp.gt.f32.partialorder %v674, 0.0
    %vm705 = vcmp.gt.f32.partialorder %v677, 0.0
    %vm706 = vcmp.gt.f32.partialorder %v682, 0.0
    %vm707 = vcmp.gt.f32.partialorder %v685, 0.0
    %vm708 = vcmp.gt.f32.partialorder %v690, 0.0
    %vm709 = vcmp.gt.f32.partialorder %v693, 0.0
    %vm710 = vcmp.gt.f32.partialorder %v698, 0.0
    %vm711 = vcmp.gt.f32.partialorder %v701, 0.0
    %v712 = vmul.f32 %v674, 1.442695
    %v713 = vpow.pop %v712
    %v714 = vmul.f32 %v677, 1.442695
    %v715 = vpow.pop %v714
    %v716 = vmul.f32 %v682, 1.442695
    %v717 = vpow.pop %v716
    %v718 = vmul.f32 %v685, 1.442695
    %v719 = vpow.pop %v718
    %v720 = vmul.f32 %v690, 1.442695
    %v721 = vpow.pop %v720
    %v722 = vmul.f32 %v693, 1.442695
    %v723 = vpow.pop %v722
    %v724 = vmul.f32 %v698, 1.442695
    %v725 = vpow.pop %v724
    %v726 = vmul.f32 %v701, 1.442695
    %v727 = vpow.pop %v726
    %v728 = vsub.f32 %v713, 1.0
    %v729 = vsub.f32 %v715, 1.0
    %v730 = vsub.f32 %v717, 1.0
    %v731 = vsub.f32 %v719, 1.0
    %v732 = vsub.f32 %v721, 1.0
    %v733 = vsub.f32 %v723, 1.0
    %v734 = vsub.f32 %v725, 1.0
    %v735 = vsub.f32 %v727, 1.0
    %v736 = vsel %vm704, %v674, %v728
    %v737 = vsel %vm705, %v677, %v729
    %v738 = vsel %vm706, %v682, %v730
    %v739 = vsel %vm707, %v685, %v731
    %v740 = vsel %vm708, %v690, %v732
    %v741 = vsel %vm709, %v693, %v733
    %v742 = vsel %vm710, %v698, %v734
    %v743 = vsel %vm711, %v701, %v735
    %v744 = vpack.c.bf16 %v737, %v736
    %v745 = vpack.c.bf16 %v739, %v738
    %v746 = vpack.c.bf16 %v741, %v740
    %v747 = vpack.c.bf16 %v743, %v742
    %s748 = scalar_lea.vmem %s3, 64
    %v749 = vld [vmem:[%s748] sm:$0xf]
    %v750 = vld [vmem:[%s748 + $0x4] sm:$0xf]
    %v751 = vld [vmem:[%s748 + $0x8] sm:$0xf]
    %v752 = vld [vmem:[%s748 + $0xc] sm:$0xf]
    %v753 = vld [vmem:[%s748 + $0x10] sm:$0xf]
    %v754 = vld [vmem:[%s748 + $0x14] sm:$0xf]
    %v755 = vld [vmem:[%s748 + $0x18] sm:$0xf]
    %v756 = vld [vmem:[%s748 + $0x1c] sm:$0xf]
    %s757 = scalar_lea.vmem %s4, 128
    %v758 = vld [vmem:[%s757] sm:$0xff]
    %v759 = vld [vmem:[%s757 + $0x8] sm:$0xff]
    %v760 = vld [vmem:[%s757 + $0x10] sm:$0xff]
    %v761 = vld [vmem:[%s757 + $0x18] sm:$0xff]
    %v762 = vld [vmem:[%s757 + $0x20] sm:$0xff]
    %v763 = vld [vmem:[%s757 + $0x28] sm:$0xff]
    %v764 = vld [vmem:[%s757 + $0x30] sm:$0xff]
    %v765 = vld [vmem:[%s757 + $0x38] sm:$0xff]
    %767 = vset.pattern.permute.xlu0 0
    %768 = vperm.xlu0 %767, %v758
    %v769 = vpop.permute.xlu0 %768
    %772 = vset.pattern.permute.xlu0 0
    %773 = vperm.xlu0 %772, %v759
    %v774 = vpop.permute.xlu0 %773
    %777 = vset.pattern.permute.xlu0 0
    %778 = vperm.xlu0 %777, %v760
    %v779 = vpop.permute.xlu0 %778
    %782 = vset.pattern.permute.xlu0 0
    %783 = vperm.xlu0 %782, %v761
    %v784 = vpop.permute.xlu0 %783
    %787 = vset.pattern.permute.xlu0 0
    %788 = vperm.xlu0 %787, %v762
    %v789 = vpop.permute.xlu0 %788
    %792 = vset.pattern.permute.xlu0 0
    %793 = vperm.xlu0 %792, %v763
    %v794 = vpop.permute.xlu0 %793
    %797 = vset.pattern.permute.xlu0 0
    %798 = vperm.xlu0 %797, %v764
    %v799 = vpop.permute.xlu0 %798
    %802 = vset.pattern.permute.xlu0 0
    %803 = vperm.xlu0 %802, %v765
    %v804 = vpop.permute.xlu0 %803
    %v814 = vunpack.c.l.b16 %v749
    %v815 = vunpack.c.l.b16 %v750
    %v816 = vunpack.c.l.b16 %v751
    %v817 = vunpack.c.l.b16 %v752
    %v818 = vunpack.c.l.b16 %v753
    %v819 = vunpack.c.l.b16 %v754
    %v820 = vunpack.c.l.b16 %v755
    %v821 = vunpack.c.l.b16 %v756
    %v822 = vpack.c.b16 %v815, %v814
    %v823 = vpack.c.b16 %v817, %v816
    %v824 = vpack.c.b16 %v819, %v818
    %v825 = vpack.c.b16 %v821, %v820
    %v827 = vsel %vm403, %v822, 0
    %v830 = vsel %vm403, %v823, 0
    %v833 = vsel %vm403, %v824, 0
    %v836 = vsel %vm403, %v825, 0
    %838 = vmatprep.subr.bf16.mxu0 0
    %839 = vmatpush1.bf16.msra.mxu0 %v744
    %840 = vmatprep.subr.bf16.mxu0 0
    %841 = vmatpush1.bf16.msra.mxu0 %v745
    %842 = vmatprep.subr.bf16.mxu0 0
    %843 = vmatpush1.bf16.msra.mxu0 %v746
    %844 = vmatprep.subr.bf16.mxu0 0
    %845 = vmatpush1.bf16.msra.mxu0 %v747
    %846 = vmatprep.subr.bf16.mxu0 0
    %847 = vmatpush1.bf16.msra.mxu0 0
    %848 = vmatprep.subr.bf16.mxu0 0
    %849 = vmatpush1.bf16.msra.mxu0 0
    %850 = vmatprep.subr.bf16.mxu0 0
    %851 = vmatpush1.bf16.msra.mxu0 0
    %852 = vmatprep.subr.bf16.mxu0 0
    %853 = vmatpush1.bf16.msra.mxu0 0
    %854 = vmatprep.subr.bf16.mxu0 0
    %855 = vmatpush1.bf16.msra.mxu0 0
    %856 = vmatprep.subr.bf16.mxu0 0
    %857 = vmatpush1.bf16.msra.mxu0 0
    %858 = vmatprep.subr.bf16.mxu0 0
    %859 = vmatpush1.bf16.msra.mxu0 0
    %860 = vmatprep.subr.bf16.mxu0 0
    %861 = vmatpush1.bf16.msra.mxu0 0
    %862 = vmatprep.subr.bf16.mxu0 0
    %863 = vmatpush1.bf16.msra.mxu0 0
    %864 = vmatprep.subr.bf16.mxu0 0
    %865 = vmatpush1.bf16.msra.mxu0 0
    %866 = vmatprep.subr.bf16.mxu0 0
    %867 = vmatpush1.bf16.msra.mxu0 0
    %868 = vmatprep.subr.bf16.mxu0 0
    %869 = vmatpush1.bf16.msra.mxu0 0
    %870 = vmatprep.mubr.bf16.mxu0 0
    %871 = vmatmul.mubr.bf16.gmra.mrb[0].mxu0 %v827
    %v872 = vpop.f32.mrb[0].mxu0
    %v873 = vadd.f32 %v769, %v872
    %v874 = vpop.f32.mrb[0].mxu0
    %v875 = vpop.f32.mrb[0].mxu0
    %v876 = vadd.f32 %v774, %v875
    %v877 = vpop.f32.mrb[0].mxu0
    %878 = vmatprep.mubr.bf16.mxu0 0
    %879 = vmatmul.mubr.bf16.gmra.mrb[0].mxu0 %v830
    %v880 = vpop.f32.mrb[0].mxu0
    %v881 = vadd.f32 %v779, %v880
    %v882 = vpop.f32.mrb[0].mxu0
    %v883 = vpop.f32.mrb[0].mxu0
    %v884 = vadd.f32 %v784, %v883
    %v885 = vpop.f32.mrb[0].mxu0
    %886 = vmatprep.mubr.bf16.mxu0 0
    %887 = vmatmul.mubr.bf16.gmra.mrb[0].mxu0 %v833
    %v888 = vpop.f32.mrb[0].mxu0
    %v889 = vadd.f32 %v789, %v888
    %v890 = vpop.f32.mrb[0].mxu0
    %v891 = vpop.f32.mrb[0].mxu0
    %v892 = vadd.f32 %v794, %v891
    %v893 = vpop.f32.mrb[0].mxu0
    %894 = vmatprep.mubr.bf16.mxu0 0
    %895 = vmatmul.mubr.bf16.gmra.mrb[0].mxu0 %v836
    %v896 = vpop.f32.mrb[0].mxu0
    %v897 = vadd.f32 %v799, %v896
    %v898 = vpop.f32.mrb[0].mxu0
    %v899 = vpop.f32.mrb[0].mxu0
    %v900 = vadd.f32 %v804, %v899
    %v901 = vpop.f32.mrb[0].mxu0
    %902 = vdwg.mxu0
    %vm903 = vcmp.gt.f32.partialorder %v873, 0.0
    %vm904 = vcmp.gt.f32.partialorder %v876, 0.0
    %vm905 = vcmp.gt.f32.partialorder %v881, 0.0
    %vm906 = vcmp.gt.f32.partialorder %v884, 0.0
    %vm907 = vcmp.gt.f32.partialorder %v889, 0.0
    %vm908 = vcmp.gt.f32.partialorder %v892, 0.0
    %vm909 = vcmp.gt.f32.partialorder %v897, 0.0
    %vm910 = vcmp.gt.f32.partialorder %v900, 0.0
    %v911 = vmul.f32 %v873, 1.442695
    %v912 = vpow.pop %v911
    %v913 = vmul.f32 %v876, 1.442695
    %v914 = vpow.pop %v913
    %v915 = vmul.f32 %v881, 1.442695
    %v916 = vpow.pop %v915
    %v917 = vmul.f32 %v884, 1.442695
    %v918 = vpow.pop %v917
    %v919 = vmul.f32 %v889, 1.442695
    %v920 = vpow.pop %v919
    %v921 = vmul.f32 %v892, 1.442695
    %v922 = vpow.pop %v921
    %v923 = vmul.f32 %v897, 1.442695
    %v924 = vpow.pop %v923
    %v925 = vmul.f32 %v900, 1.442695
    %v926 = vpow.pop %v925
    %v927 = vsub.f32 %v912, 1.0
    %v928 = vsub.f32 %v914, 1.0
    %v929 = vsub.f32 %v916, 1.0
    %v930 = vsub.f32 %v918, 1.0
    %v931 = vsub.f32 %v920, 1.0
    %v932 = vsub.f32 %v922, 1.0
    %v933 = vsub.f32 %v924, 1.0
    %v934 = vsub.f32 %v926, 1.0
    %v935 = vsel %vm903, %v873, %v927
    %v936 = vsel %vm904, %v876, %v928
    %v937 = vsel %vm905, %v881, %v929
    %v938 = vsel %vm906, %v884, %v930
    %v939 = vsel %vm907, %v889, %v931
    %v940 = vsel %vm908, %v892, %v932
    %v941 = vsel %vm909, %v897, %v933
    %v942 = vsel %vm910, %v900, %v934
    %v943 = vpack.c.bf16 %v936, %v935
    %v944 = vpack.c.bf16 %v938, %v937
    %v945 = vpack.c.bf16 %v940, %v939
    %v946 = vpack.c.bf16 %v942, %v941
    %s947 = scalar_lea.vmem %s3, 96
    %v948 = vld [vmem:[%s947] sm:$0xf]
    %v949 = vld [vmem:[%s947 + $0x4] sm:$0xf]
    %v950 = vld [vmem:[%s947 + $0x8] sm:$0xf]
    %v951 = vld [vmem:[%s947 + $0xc] sm:$0xf]
    %v952 = vld [vmem:[%s947 + $0x10] sm:$0xf]
    %v953 = vld [vmem:[%s947 + $0x14] sm:$0xf]
    %v954 = vld [vmem:[%s947 + $0x18] sm:$0xf]
    %v955 = vld [vmem:[%s947 + $0x1c] sm:$0xf]
    %s956 = scalar_lea.vmem %s4, 192
    %v957 = vld [vmem:[%s956] sm:$0xff]
    %v958 = vld [vmem:[%s956 + $0x8] sm:$0xff]
    %v959 = vld [vmem:[%s956 + $0x10] sm:$0xff]
    %v960 = vld [vmem:[%s956 + $0x18] sm:$0xff]
    %v961 = vld [vmem:[%s956 + $0x20] sm:$0xff]
    %v962 = vld [vmem:[%s956 + $0x28] sm:$0xff]
    %v963 = vld [vmem:[%s956 + $0x30] sm:$0xff]
    %v964 = vld [vmem:[%s956 + $0x38] sm:$0xff]
    %966 = vset.pattern.permute.xlu0 0
    %967 = vperm.xlu0 %966, %v957
    %v968 = vpop.permute.xlu0 %967
    %971 = vset.pattern.permute.xlu0 0
    %972 = vperm.xlu0 %971, %v958
    %v973 = vpop.permute.xlu0 %972
    %976 = vset.pattern.permute.xlu0 0
    %977 = vperm.xlu0 %976, %v959
    %v978 = vpop.permute.xlu0 %977
    %981 = vset.pattern.permute.xlu0 0
    %982 = vperm.xlu0 %981, %v960
    %v983 = vpop.permute.xlu0 %982
    %986 = vset.pattern.permute.xlu0 0
    %987 = vperm.xlu0 %986, %v961
    %v988 = vpop.permute.xlu0 %987
    %991 = vset.pattern.permute.xlu0 0
    %992 = vperm.xlu0 %991, %v962
    %v993 = vpop.permute.xlu0 %992
    %996 = vset.pattern.permute.xlu0 0
    %997 = vperm.xlu0 %996, %v963
    %v998 = vpop.permute.xlu0 %997
    %1001 = vset.pattern.permute.xlu0 0
    %1002 = vperm.xlu0 %1001, %v964
    %v1003 = vpop.permute.xlu0 %1002
    %v1013 = vunpack.c.l.b16 %v948
    %v1014 = vunpack.c.l.b16 %v949
    %v1015 = vunpack.c.l.b16 %v950
    %v1016 = vunpack.c.l.b16 %v951
    %v1017 = vunpack.c.l.b16 %v952
    %v1018 = vunpack.c.l.b16 %v953
    %v1019 = vunpack.c.l.b16 %v954
    %v1020 = vunpack.c.l.b16 %v955
    %v1021 = vpack.c.b16 %v1014, %v1013
    %v1022 = vpack.c.b16 %v1016, %v1015
    %v1023 = vpack.c.b16 %v1018, %v1017
    %v1024 = vpack.c.b16 %v1020, %v1019
    %v1026 = vsel %vm403, %v1021, 0
    %v1029 = vsel %vm403, %v1022, 0
    %v1032 = vsel %vm403, %v1023, 0
    %v1035 = vsel %vm403, %v1024, 0
    %1037 = vmatprep.subr.bf16.mxu0 0
    %1038 = vmatpush1.bf16.msra.mxu0 %v943
    %1039 = vmatprep.subr.bf16.mxu0 0
    %1040 = vmatpush1.bf16.msra.mxu0 %v944
    %1041 = vmatprep.subr.bf16.mxu0 0
    %1042 = vmatpush1.bf16.msra.mxu0 %v945
    %1043 = vmatprep.subr.bf16.mxu0 0
    %1044 = vmatpush1.bf16.msra.mxu0 %v946
    %1045 = vmatprep.subr.bf16.mxu0 0
    %1046 = vmatpush1.bf16.msra.mxu0 0
    %1047 = vmatprep.subr.bf16.mxu0 0
    %1048 = vmatpush1.bf16.msra.mxu0 0
    %1049 = vmatprep.subr.bf16.mxu0 0
    %1050 = vmatpush1.bf16.msra.mxu0 0
    %1051 = vmatprep.subr.bf16.mxu0 0
    %1052 = vmatpush1.bf16.msra.mxu0 0
    %1053 = vmatprep.subr.bf16.mxu0 0
    %1054 = vmatpush1.bf16.msra.mxu0 0
    %1055 = vmatprep.subr.bf16.mxu0 0
    %1056 = vmatpush1.bf16.msra.mxu0 0
    %1057 = vmatprep.subr.bf16.mxu0 0
    %1058 = vmatpush1.bf16.msra.mxu0 0
    %1059 = vmatprep.subr.bf16.mxu0 0
    %1060 = vmatpush1.bf16.msra.mxu0 0
    %1061 = vmatprep.subr.bf16.mxu0 0
    %1062 = vmatpush1.bf16.msra.mxu0 0
    %1063 = vmatprep.subr.bf16.mxu0 0
    %1064 = vmatpush1.bf16.msra.mxu0 0
    %1065 = vmatprep.subr.bf16.mxu0 0
    %1066 = vmatpush1.bf16.msra.mxu0 0
    %1067 = vmatprep.subr.bf16.mxu0 0
    %1068 = vmatpush1.bf16.msra.mxu0 0
    %1069 = vmatprep.mubr.bf16.mxu0 0
    %1070 = vmatmul.mubr.bf16.gmra.mrb[0].mxu0 %v1026
    %v1071 = vpop.f32.mrb[0].mxu0
    %v1072 = vadd.f32 %v968, %v1071
    %v1073 = vpop.f32.mrb[0].mxu0
    %v1074 = vpop.f32.mrb[0].mxu0
    %v1075 = vadd.f32 %v973, %v1074
    %v1076 = vpop.f32.mrb[0].mxu0
    %1077 = vmatprep.mubr.bf16.mxu0 0
    %1078 = vmatmul.mubr.bf16.gmra.mrb[0].mxu0 %v1029
    %v1079 = vpop.f32.mrb[0].mxu0
    %v1080 = vadd.f32 %v978, %v1079
    %v1081 = vpop.f32.mrb[0].mxu0
    %v1082 = vpop.f32.mrb[0].mxu0
    %v1083 = vadd.f32 %v983, %v1082
    %v1084 = vpop.f32.mrb[0].mxu0
    %1085 = vmatprep.mubr.bf16.mxu0 0
    %1086 = vmatmul.mubr.bf16.gmra.mrb[0].mxu0 %v1032
    %v1087 = vpop.f32.mrb[0].mxu0
    %v1088 = vadd.f32 %v988, %v1087
    %v1089 = vpop.f32.mrb[0].mxu0
    %v1090 = vpop.f32.mrb[0].mxu0
    %v1091 = vadd.f32 %v993, %v1090
    %v1092 = vpop.f32.mrb[0].mxu0
    %1093 = vmatprep.mubr.bf16.mxu0 0
    %1094 = vmatmul.mubr.bf16.gmra.mrb[0].mxu0 %v1035
    %v1095 = vpop.f32.mrb[0].mxu0
    %v1096 = vadd.f32 %v998, %v1095
    %v1097 = vpop.f32.mrb[0].mxu0
    %v1098 = vpop.f32.mrb[0].mxu0
    %v1099 = vadd.f32 %v1003, %v1098
    %v1100 = vpop.f32.mrb[0].mxu0
    %1101 = vdwg.mxu0
    %vm1102 = vcmp.gt.f32.partialorder %v1072, 0.0
    %vm1103 = vcmp.gt.f32.partialorder %v1075, 0.0
    %vm1104 = vcmp.gt.f32.partialorder %v1080, 0.0
    %vm1105 = vcmp.gt.f32.partialorder %v1083, 0.0
    %vm1106 = vcmp.gt.f32.partialorder %v1088, 0.0
    %vm1107 = vcmp.gt.f32.partialorder %v1091, 0.0
    %vm1108 = vcmp.gt.f32.partialorder %v1096, 0.0
    %vm1109 = vcmp.gt.f32.partialorder %v1099, 0.0
    %v1110 = vmul.f32 %v1072, 1.442695
    %v1111 = vpow.pop %v1110
    %v1112 = vmul.f32 %v1075, 1.442695
    %v1113 = vpow.pop %v1112
    %v1114 = vmul.f32 %v1080, 1.442695
    %v1115 = vpow.pop %v1114
    %v1116 = vmul.f32 %v1083, 1.442695
    %v1117 = vpow.pop %v1116
    %v1118 = vmul.f32 %v1088, 1.442695
    %v1119 = vpow.pop %v1118
    %v1120 = vmul.f32 %v1091, 1.442695
    %v1121 = vpow.pop %v1120
    %v1122 = vmul.f32 %v1096, 1.442695
    %v1123 = vpow.pop %v1122
    %v1124 = vmul.f32 %v1099, 1.442695
    %v1125 = vpow.pop %v1124
    %v1126 = vsub.f32 %v1111, 1.0
    %v1127 = vsub.f32 %v1113, 1.0
    %v1128 = vsub.f32 %v1115, 1.0
    %v1129 = vsub.f32 %v1117, 1.0
    %v1130 = vsub.f32 %v1119, 1.0
    %v1131 = vsub.f32 %v1121, 1.0
    %v1132 = vsub.f32 %v1123, 1.0
    %v1133 = vsub.f32 %v1125, 1.0
    %v1134 = vsel %vm1102, %v1072, %v1126
    %v1135 = vsel %vm1103, %v1075, %v1127
    %v1136 = vsel %vm1104, %v1080, %v1128
    %v1137 = vsel %vm1105, %v1083, %v1129
    %v1138 = vsel %vm1106, %v1088, %v1130
    %v1139 = vsel %vm1107, %v1091, %v1131
    %v1140 = vsel %vm1108, %v1096, %v1132
    %v1141 = vsel %vm1109, %v1099, %v1133
    %v1142 = vpack.c.bf16 %v1135, %v1134
    %v1143 = vpack.c.bf16 %v1137, %v1136
    %v1144 = vpack.c.bf16 %v1139, %v1138
    %v1145 = vpack.c.bf16 %v1141, %v1140
    %v1146 = vld [vmem:[%s5] sm:$0x1]
    %v1147 = vld [vmem:[#allocation2] sm:$0x1]
    %1149 = vset.pattern.permute.xlu0 0
    %1150 = vperm.xlu0 %1149, %v1147
    %v1151 = vpop.permute.xlu0 %1150
    %v1153 = vlaneseq
    %v1154 = vshrl.u32 %v1153, 7
    %v1155 = vsub.s32 0, %v1154
    %v1156 = vrot.slane %v1151, %v1155
    %v1158 = vsel %vm403, %v1146, 0
    %1160 = vmatprep.subr.bf16.mxu0 0
    %1161 = vmatpush1.bf16.msra.mxu0 %v1142
    %1162 = vmatprep.subr.bf16.mxu0 0
    %1163 = vmatpush1.bf16.msra.mxu0 %v1143
    %1164 = vmatprep.subr.bf16.mxu0 0
    %1165 = vmatpush1.bf16.msra.mxu0 %v1144
    %1166 = vmatprep.subr.bf16.mxu0 0
    %1167 = vmatpush1.bf16.msra.mxu0 %v1145
    %1168 = vmatprep.subr.bf16.mxu0 0
    %1169 = vmatpush1.bf16.msra.mxu0 0
    %1170 = vmatprep.subr.bf16.mxu0 0
    %1171 = vmatpush1.bf16.msra.mxu0 0
    %1172 = vmatprep.subr.bf16.mxu0 0
    %1173 = vmatpush1.bf16.msra.mxu0 0
    %1174 = vmatprep.subr.bf16.mxu0 0
    %1175 = vmatpush1.bf16.msra.mxu0 0
    %1176 = vmatprep.subr.bf16.mxu0 0
    %1177 = vmatpush1.bf16.msra.mxu0 0
    %1178 = vmatprep.subr.bf16.mxu0 0
    %1179 = vmatpush1.bf16.msra.mxu0 0
    %1180 = vmatprep.subr.bf16.mxu0 0
    %1181 = vmatpush1.bf16.msra.mxu0 0
    %1182 = vmatprep.subr.bf16.mxu0 0
    %1183 = vmatpush1.bf16.msra.mxu0 0
    %1184 = vmatprep.subr.bf16.mxu0 0
    %1185 = vmatpush1.bf16.msra.mxu0 0
    %1186 = vmatprep.subr.bf16.mxu0 0
    %1187 = vmatpush1.bf16.msra.mxu0 0
    %1188 = vmatprep.subr.bf16.mxu0 0
    %1189 = vmatpush1.bf16.msra.mxu0 0
    %1190 = vmatprep.subr.bf16.mxu0 0
    %1191 = vmatpush1.bf16.msra.mxu0 0
    %1192 = vmatprep.mubr.bf16.mxu0 0
    %1193 = vmatmul.mubr.bf16.gmra.mrb[0].mxu0 %v1158
    %v1194 = vpop.f32.mrb[0].mxu0
    %v1195 = vadd.f32 %v1156, %v1194
    %v1196 = vpop.f32.mrb[0].mxu0
    %v1197 = vpop.f32.mrb[0].mxu0
    %v1198 = vpop.f32.mrb[0].mxu0
    %1199 = vdwg.mxu0
    %v1200 = vsub.f32 0.0, %v1195
    %v1201 = vmul.f32 %v1200, 1.442695
    %v1202 = vpow.pop %v1201
    %v1203 = vadd.f32 %v1202, 1.0
    %v1204 = vrcp.pop %v1203
    %v1205 = vmul.f32 1.0, %v1204
    %1206 = vst [vmem:[#allocation3] sm:$0x1] %v1205
    // Predicated region
    $region30: #{tpu_custom_call.1} parent=1 // pred_check
      _
    $region31: #{tpu_custom_call.1} parent=1 // pred_check_branch
      %1208 = sbr.rel (0) target = $region33
    $region32: #{tpu_custom_call.1} parent=1 // pred_region
      %s1210 = ssub.s32 16, 16
      %1211 = vsyncadd [#allocation4], %s1210
      %s1213 = sshll.u32 [#allocation3], 4
      %s1214 = int_to_ptr.vmem [resolvable:$true] %s1213
      %1216 = dma.vmem_to_hbm [thread:$0]  %s1214, 16, %s7, [#allocation4]
    $region33: #{tpu_custom_call.1} parent=1 // pred_fallthru
      _
    // Predicated region
    $region34: #{tpu_custom_call.1} parent=1 // pred_check
      _
    $region35: #{tpu_custom_call.1} parent=1 // pred_check_branch
      %1218 = sbr.rel (0) target = $region37
    $region36: #{tpu_custom_call.1} parent=1 // pred_region
      %1219 = dma.done [#allocation4], 16
    $region37: #{tpu_custom_call.1} parent=1 // pred_fallthru
      _
    %1220 = vsyncpa [#allocation4], 1

</llo_original>
